<compile_context>
chip_gen: v5e
topology: v5e:2x2
jax: 0.10.0
libtpu: 0.0.40
codegen_flags: <defaults>
</compile_context>

<pallas_src>
import functools

import jax
import jax.numpy as jnp
from jax.experimental import pallas as pl
from jax.experimental.pallas import tpu as pltpu


def _soft_attention_kernel_small_c(x_ref, w_ref, b_ref, o_ref, *, C):
    # x_ref: (C, T) slab of channels x flattened-spatial
    # w_ref: (C,)   1x1-conv weight in SMEM (scalar reads)
    # b_ref: (1,)   bias in SMEM
    # o_ref: (C, T)
    x = x_ref[...]
    xf = x.astype(jnp.float32)
    # Unrolled multiply-accumulate over channels -- pure VPU work.
    s = xf[0:1, :] * w_ref[0] + b_ref[0]
    for c in range(1, C):
        s = s + xf[c:c + 1, :] * w_ref[c]
    a = jax.nn.sigmoid(s)                     # (1, T) attention weights (EUP)
    o_ref[...] = x * a.astype(x.dtype)        # gate in the input dtype


def _soft_attention_kernel_large_c(x_ref, w_ref, b_ref, o_ref):
    # x_ref: (C, T); w_ref: (C, 1) in VMEM; b_ref: (1,) in SMEM; o_ref: (C, T)
    x = x_ref[...]
    xf = x.astype(jnp.float32)
    w = w_ref[...].astype(jnp.float32)                        # (C, 1) lane-broadcast
    s = jnp.sum(xf * w, axis=0, keepdims=True) + b_ref[0]     # (1, T) sublane reduce (XLU)
    a = jax.nn.sigmoid(s)
    o_ref[...] = x * a.astype(x.dtype)


@functools.partial(jax.jit, static_argnames=("t_hw",))
def soft_attention(x_nchw, weight, bias, *, t_hw=16384):
    """Pallas equivalent of SoftAttention.forward.

    x_nchw: (N, C, H, W)
    weight: (C, 1) or (C,) -- squeezed Conv2d(in_channels, 1, kernel_size=1) weight
    bias:   (1,)           -- Conv2d bias
    returns (N, C, H, W)
    """
    N, C, H, W = x_nchw.shape
    HW = H * W
    x3 = x_nchw.reshape(N, C, HW)             # free view: no transpose, no copy

    # Lane-dense spatial tile.  Budget ~8 MiB for the double-buffered in + out
    # tiles so the default scoped-VMEM limit is comfortable on v5e (16 MiB)
    # and v7x (32 MiB scoped / 64 MiB physical).
    itemsize = jnp.dtype(x_nchw.dtype).itemsize
    max_t = max(128, ((8 * 1024 * 1024) // (4 * itemsize * C)) // 128 * 128)
    t = min(t_hw, max_t)

    if HW <= t:
        T = HW                                # full extent: legal for any size
        num_t = 1
    else:
        T = t                                 # multiple of 128 -> lane dense
        num_t = pl.cdiv(HW, T)                # ragged tail -> masked store, no pad copy

    grid = (N, num_t)

    x_spec = pl.BlockSpec((pl.Squeezed(), C, T), lambda n, j: (n, 0, j))
    o_spec = pl.BlockSpec((pl.Squeezed(), C, T), lambda n, j: (n, 0, j))

    if C <= 32:
        # Small channel count: weights live in SMEM, unrolled scalar MACs.
        kernel = functools.partial(_soft_attention_kernel_small_c, C=C)
        w_arg = weight.reshape(C).astype(jnp.float32)
        w_spec = pl.BlockSpec(memory_space=pltpu.SMEM)
    else:
        # Larger C: tiny VMEM weight column, VPU multiply + sublane reduce.
        kernel = _soft_attention_kernel_large_c
        w_arg = weight.reshape(C, 1)
        w_spec = pl.BlockSpec((C, 1), lambda n, j: (0, 0))

    out3 = pl.pallas_call(
        kernel,
        out_shape=jax.ShapeDtypeStruct((N, C, HW), x_nchw.dtype),
        grid_spec=pltpu.PrefetchScalarGridSpec(
            num_scalar_prefetch=0,
            grid=grid,
            in_specs=[x_spec, w_spec, pl.BlockSpec(memory_space=pltpu.SMEM)],
            out_specs=o_spec,
        ),
        compiler_params=pltpu.CompilerParams(
            dimension_semantics=("parallel", "parallel")),
    )(x3, w_arg, bias.astype(jnp.float32))

    return out3.reshape(N, C, H, W)


def _reference(x_nchw, weight, bias):
    # pure-JAX reference of the PyTorch forward:
    # attention_weights = sigmoid(conv1x1(x)); attended = x * attention_weights
    w = weight.reshape(-1)
    aw = jnp.einsum("nchw,c->nhw", x_nchw, w) + bias[0]       # (N,H,W)
    aw = jax.nn.sigmoid(aw)[:, None, :, :]                    # (N,1,H,W)
    return x_nchw * aw


if __name__ == "__main__":
    key = jax.random.PRNGKey(0)
    k_x, k_w, k_b = jax.random.split(key, 3)

    # small shapes consistent with the module: batch=2, in_channels=4, spatial=16
    N, C, H, W = 2, 4, 16, 16
    x = jax.random.normal(k_x, (N, C, H, W), dtype=jnp.float32)

    # deterministic parameter init (Conv2d(C, 1, kernel_size=1) shapes):
    # weight (1, C, 1, 1) -> squeezed to (C, 1); bias (1,)
    bound = 1.0 / jnp.sqrt(jnp.float32(C))
    weight = jax.random.uniform(k_w, (C, 1), jnp.float32, -bound, bound)
    bias = jax.random.uniform(k_b, (1,), jnp.float32, -bound, bound)

    out = jax.block_until_ready(soft_attention(x, weight, bias))
    ref = _reference(x, weight, bias)
    assert out.shape == (N, C, H, W)
    assert jnp.allclose(out, ref, atol=1e-5, rtol=1e-5), "mismatch vs reference"

    # also exercise the ragged spatial-tiling path (HW=400, T=128 -> masked tail)
    x2 = jax.random.normal(jax.random.PRNGKey(1), (1, C, 20, 20), dtype=jnp.float32)
    out2 = jax.block_until_ready(soft_attention(x2, weight, bias, t_hw=128))
    ref2 = _reference(x2, weight, bias)
    assert jnp.allclose(out2, ref2, atol=1e-5, rtol=1e-5), "mismatch vs reference (ragged)"

    print("KERNEL_OK")
</pallas_src>

<mosaic_0001>
module attributes {stable_mosaic.version = 11 : i64} {
  func.func @_soft_attention_kernel_small_c(%arg0: i32, %arg1: i32, %arg2: memref<1x4x256xf32, #tpu.memory_space<vmem>>, %arg3: memref<4xf32, #tpu.memory_space<smem>>, %arg4: memref<1xf32, #tpu.memory_space<smem>>, %arg5: memref<1x4x256xf32, #tpu.memory_space<vmem>>) attributes {dimension_semantics = [#tpu.dimension_semantics<parallel>, #tpu.dimension_semantics<parallel>], iteration_bounds = array<i64: 2, 1>, scalar_prefetch = 0 : i64, scratch_operands = 0 : i64, tpu.core_type = #tpu.core_type<tc>, window_params = [{transform_indices = @transform_0, window_bounds = array<i64: 1, 4, 256>}, {transform_indices = @transform_1, window_bounds = array<i64: 4>}, {transform_indices = @transform_2, window_bounds = array<i64: 1>}, {transform_indices = @transform_3, window_bounds = array<i64: 1, 4, 256>}]} {
    %c0 = arith.constant 0 : index
    %c0_0 = arith.constant 0 : index
    %c0_1 = arith.constant 0 : index
    %0 = vector.load %arg2[%c0, %c0_0, %c0_1] : memref<1x4x256xf32, #tpu.memory_space<vmem>>, vector<1x4x256xf32>
    %1 = vector.shape_cast %0 : vector<1x4x256xf32> to vector<4x256xf32>
    %2 = vector.extract_strided_slice %1 {offsets = [0, 0], sizes = [1, 256], strides = [1, 1]} : vector<4x256xf32> to vector<1x256xf32>
    %c0_2 = arith.constant 0 : index
    %3 = memref.load %arg3[%c0_2] : memref<4xf32, #tpu.memory_space<smem>>
    %4 = vector.broadcast %3 : f32 to vector<1x256xf32>
    %5 = arith.mulf %2, %4 : vector<1x256xf32>
    %c0_3 = arith.constant 0 : index
    %6 = memref.load %arg4[%c0_3] : memref<1xf32, #tpu.memory_space<smem>>
    %7 = vector.broadcast %6 : f32 to vector<1x256xf32>
    %8 = arith.addf %5, %7 : vector<1x256xf32>
    %9 = vector.extract_strided_slice %1 {offsets = [1, 0], sizes = [1, 256], strides = [1, 1]} : vector<4x256xf32> to vector<1x256xf32>
    %c1 = arith.constant 1 : index
    %10 = memref.load %arg3[%c1] : memref<4xf32, #tpu.memory_space<smem>>
    %11 = vector.broadcast %10 : f32 to vector<1x256xf32>
    %12 = arith.mulf %9, %11 : vector<1x256xf32>
    %13 = arith.addf %8, %12 : vector<1x256xf32>
    %14 = vector.extract_strided_slice %1 {offsets = [2, 0], sizes = [1, 256], strides = [1, 1]} : vector<4x256xf32> to vector<1x256xf32>
    %c2 = arith.constant 2 : index
    %15 = memref.load %arg3[%c2] : memref<4xf32, #tpu.memory_space<smem>>
    %16 = vector.broadcast %15 : f32 to vector<1x256xf32>
    %17 = arith.mulf %14, %16 : vector<1x256xf32>
    %18 = arith.addf %13, %17 : vector<1x256xf32>
    %19 = vector.extract_strided_slice %1 {offsets = [3, 0], sizes = [1, 256], strides = [1, 1]} : vector<4x256xf32> to vector<1x256xf32>
    %c3 = arith.constant 3 : index
    %20 = memref.load %arg3[%c3] : memref<4xf32, #tpu.memory_space<smem>>
    %21 = vector.broadcast %20 : f32 to vector<1x256xf32>
    %22 = arith.mulf %19, %21 : vector<1x256xf32>
    %23 = arith.addf %18, %22 : vector<1x256xf32>
    %24 = arith.negf %23 : vector<1x256xf32>
    %25 = math.exp %24 : vector<1x256xf32>
    %cst = arith.constant 1.000000e+00 : f32
    %26 = vector.broadcast %cst : f32 to vector<1x256xf32>
    %27 = arith.addf %26, %25 : vector<1x256xf32>
    %28 = arith.divf %26, %27 : vector<1x256xf32>
    %29 = vector.broadcast %28 : vector<1x256xf32> to vector<4x256xf32>
    %30 = arith.mulf %1, %29 : vector<4x256xf32>
    %c0_4 = arith.constant 0 : index
    %c0_5 = arith.constant 0 : index
    %c0_6 = arith.constant 0 : index
    %31 = vector.load %arg5[%c0_4, %c0_5, %c0_6] : memref<1x4x256xf32, #tpu.memory_space<vmem>>, vector<1x4x256xf32>
    %32 = vector.shape_cast %31 : vector<1x4x256xf32> to vector<4x256xf32>
    %33 = vector.shape_cast %30 : vector<4x256xf32> to vector<1x4x256xf32>
    tpu.vector_store %arg5[%c0_4, %c0_5, %c0_6], %33 {strides = array<i32>} : memref<1x4x256xf32, #tpu.memory_space<vmem>>, vector<1x4x256xf32>,
    return
  }
  func.func @transform_0(%arg0: i32, %arg1: i32) -> (i32, i32, i32) {
    %c0_i32 = arith.constant 0 : i32
    %c0_i32_0 = arith.constant 0 : i32
    return %arg0, %c0_i32, %arg1 : i32, i32, i32
  }
  func.func @transform_1(%arg0: i32, %arg1: i32) -> i32 {
    %c0_i32 = arith.constant 0 : i32
    %c0_i32_0 = arith.constant 0 : i32
    return %c0_i32 : i32
  }
  func.func @transform_2(%arg0: i32, %arg1: i32) -> i32 {
    %c0_i32 = arith.constant 0 : i32
    %c0_i32_0 = arith.constant 0 : i32
    return %c0_i32 : i32
  }
  func.func @transform_3(%arg0: i32, %arg1: i32) -> (i32, i32, i32) {
    %c0_i32 = arith.constant 0 : i32
    %c0_i32_0 = arith.constant 0 : i32
    return %arg0, %c0_i32, %arg1 : i32, i32, i32
  }
}

</mosaic_0001>

<llo_original>
// kernel: soft_attention.1
$region0: #{soft_attention.1}
  #allocation0 [shape = 'u32[]', space=smem, size = 0x4, offset = 0x4, fixed_abs, tag = 'smem constant byte address 0x4 - core index']
  #allocation1 [shape = 'u32[72,128]{1,0:T(1,128)}', space=vmem, size = 0x9000, scoped, tag = 'internal scratch']
  #allocation2 [shape = 'f32[1]{0:T(128)S(6)}', space=smem, size = 0x200, scoped, tag = 'scoped memory for soft_attention.1']
  %s0 = inlined_call_operand.vmem [shape: f32[2,4,256], index: 0, kind: input, shape index: {}]
  %s1 = inlined_call_operand.vmem [shape: f32[4], index: 1, kind: input, shape index: {}]
  %s2 = inlined_call_operand.<no memory space> [shape: f32[1], index: 2, kind: input, shape index: {}]
  %s3 = inlined_call_operand.vmem [shape: f32[2,4,256], index: 3, kind: output, shape index: {}]
  %s4 = sld [smem:[#allocation0]]
  $region49: #{soft_attention.1} parent=0
    _
  %s6 = ssub.s32 1, %s4
  %s7 = scalar_select 0, %s6, %s4
  %8 = sst [smem:[#allocation2]] %s2
  $region1: #{soft_attention.1} parent=0
    #allocation3 [shape = 'u8[512]{0}', space=smem, size = 0x200, scoped, tag = 'input window, operand 1, single buffered']
    #allocation4 [shape = 's32[2]{0}', space=sflag, size = 0x8, scoped, tag = 'scoped memory for soft_attention.1']
    %9 = vsyncpa [#allocation4], 0
    loop: start=0, step=1, limit=4
    $region2: #{soft_attention.1} parent=1 // loop_pre_header
      _
    $region3: #{soft_attention.1} parent=1 // loop_header
      %s11 = sphi 0, %s15
      %p12 = scmp.ge.s32.totalorder %s11, 4
      %s18 = sphi 0, %s30
      %s19 = sphi 0, %s26
      %s20 = sphi 0, %s18
      %s21 = sphi 0, %s19
      %s22 = sphi 0, %s20
      %s23 = sphi 0, %s21
      %s35 = sphi 0, %s37
      %s38 = sphi 0, %s35
      %s39 = sphi 0, %s38
      %s55 = sphi 0, %s39
      %s59 = sphi 0, %s59
      %s61 = sphi 0, %s59
      %s62 = sphi 0, %s61
      %s76 = sphi 0, %s62
      %s80 = sphi 0, %s80
      %s82 = sphi 0, %s80
      %s83 = sphi 0, %s82
      %s97 = sphi 0, %s83
      %s105 = sphi 0, %s107
      %s108 = sphi 0, %s105
      %s109 = sphi 0, %s108
      %s125 = sphi 0, %s109
    $region4: #{soft_attention.1} parent=1 // loop_header_branch
      %14 = sbr.rel (%p12) target = $region8
    $region5: #{soft_attention.1} parent=1 // loop_body
      %s16 = ssub.s32 %s11, 1
      %s17 = ssub.s32 %s11, 2
      %s24 = sadd.s32 1, %s19
      %p25 = scmp.ge.s32.totalorder %s24, 1
      %s26 = scalar_select %p25, 0, %s24
      %s27 = sadd.s32 1, %s18
      %s28 = scalar_select %p25, %s27, %s18
      %p29 = scmp.ge.s32.totalorder %s28, 2
      %s30 = scalar_select %p29, 0, %s28
      %s31 = ssub.s32 %s18, %s30
      %s32 = ssub.s32 %s19, %s26
      %s33 = sor.u32 %s31, %s32
      %p34 = scmp.eq.s32.totalorder %s33, 0
      %s36 = sadd.s32 %s35, 1
      %s37 = scalar_select %p34, %s35, %s36
      %p40 = pneg %p34
      %p41 = scmp.eq.s32.totalorder %s11, 1
      %p42 = por %p40, %p41
      %p43 = scmp.ne.s32.totalorder %s35, %s38
      %p44 = scmp.eq.s32.totalorder %s11, 0
      %p45 = por %p43, %p44
      %p46 = scmp.ne.s32.totalorder %s35, %s38
      %p47 = scmp.eq.s32.totalorder %s16, 1
      %p48 = por %p46, %p47
      %p49 = scmp.ne.s32.totalorder %s38, %s39
      %p50 = scmp.eq.s32.totalorder %s16, 0
      %p51 = por %p49, %p50
      %p52 = scmp.ne.s32.totalorder %s38, %s39
      %p53 = scmp.eq.s32.totalorder %s17, 1
      %p54 = por %p52, %p53
      %p56 = scmp.ne.s32.totalorder %s39, %s55
      %p57 = scmp.eq.s32.totalorder %s17, 0
      %p58 = por %p56, %p57
      %s60 = sadd.s32 %s59, 1
      %p63 = scmp.eq.s32.totalorder %s11, 1
      %p64 = scmp.ne.s32.totalorder %s59, %s61
      %p65 = scmp.eq.s32.totalorder %s11, 0
      %p66 = por %p64, %p65
      %p67 = scmp.ne.s32.totalorder %s59, %s61
      %p68 = scmp.eq.s32.totalorder %s16, 1
      %p69 = por %p67, %p68
      %p70 = scmp.ne.s32.totalorder %s61, %s62
      %p71 = scmp.eq.s32.totalorder %s16, 0
      %p72 = por %p70, %p71
      %p73 = scmp.ne.s32.totalorder %s61, %s62
      %p74 = scmp.eq.s32.totalorder %s17, 1
      %p75 = por %p73, %p74
      %p77 = scmp.ne.s32.totalorder %s62, %s76
      %p78 = scmp.eq.s32.totalorder %s17, 0
      %p79 = por %p77, %p78
      %s81 = sadd.s32 %s80, 1
      %p84 = scmp.eq.s32.totalorder %s11, 1
      %p85 = scmp.ne.s32.totalorder %s80, %s82
      %p86 = scmp.eq.s32.totalorder %s11, 0
      %p87 = por %p85, %p86
      %p88 = scmp.ne.s32.totalorder %s80, %s82
      %p89 = scmp.eq.s32.totalorder %s16, 1
      %p90 = por %p88, %p89
      %p91 = scmp.ne.s32.totalorder %s82, %s83
      %p92 = scmp.eq.s32.totalorder %s16, 0
      %p93 = por %p91, %p92
      %p94 = scmp.ne.s32.totalorder %s82, %s83
      %p95 = scmp.eq.s32.totalorder %s17, 1
      %p96 = por %p94, %p95
      %p98 = scmp.ne.s32.totalorder %s83, %s97
      %p99 = scmp.eq.s32.totalorder %s17, 0
      %p100 = por %p98, %p99
      %s101 = ssub.s32 %s18, %s30
      %s102 = ssub.s32 %s19, %s26
      %s103 = sor.u32 %s101, %s102
      %p104 = scmp.eq.s32.totalorder %s103, 0
      %s106 = sadd.s32 %s105, 1
      %s107 = scalar_select %p104, %s105, %s106
      %p110 = pneg %p104
      %p111 = scmp.eq.s32.totalorder %s11, 1
      %p112 = por %p110, %p111
      %p113 = scmp.ne.s32.totalorder %s105, %s108
      %p114 = scmp.eq.s32.totalorder %s11, 0
      %p115 = por %p113, %p114
      %p116 = scmp.ne.s32.totalorder %s105, %s108
      %p117 = scmp.eq.s32.totalorder %s16, 1
      %p118 = por %p116, %p117
      %p119 = scmp.ne.s32.totalorder %s108, %s109
      %p120 = scmp.eq.s32.totalorder %s16, 0
      %p121 = por %p119, %p120
      %p122 = scmp.ne.s32.totalorder %s108, %s109
      %p123 = scmp.eq.s32.totalorder %s17, 1
      %p124 = por %p122, %p123
      %p126 = scmp.ne.s32.totalorder %s109, %s125
      %p127 = scmp.eq.s32.totalorder %s17, 0
      %p128 = por %p126, %p127
      %p129 = scmp.le.s32.totalorder 1, %s11
      %p130 = scmp.lt.s32.totalorder %s11, 3
      %p131 = pnand %p129, %p130
      %p132 = pneg %p131
      // Predicated region
      $region9: #{soft_attention.1} parent=5 // pred_check
        _
      $region10: #{soft_attention.1} parent=5 // pred_check_branch
        %134 = sbr.rel (%p131) target = $region12
      $region11: #{soft_attention.1} parent=5 // pred_region
        %s135 = ssub.s32 %s11, 1
        // Predicated region
        $region13: #{soft_attention.1} parent=11 // pred_check
          %p136 = pneg %p72
        $region14: #{soft_attention.1} parent=11 // pred_check_branch
          %138 = sbr.rel (%p136) target = $region16
        $region15: #{soft_attention.1} parent=11 // pred_region
          %140 = vsyncadd [#allocation4], 0
          %s142 = sshll.u32 %s1, 4
          %s143 = int_to_ptr.vmem [resolvable:$true] %s142
          %145 = dma.vmem_to_smem %s143, 16, [#allocation3], [#allocation4]
        $region16: #{soft_attention.1} parent=11 // pred_fallthru
          _
        // Predicated region
        $region17: #{soft_attention.1} parent=11 // pred_check
          %p146 = pneg %p93
        $region18: #{soft_attention.1} parent=11 // pred_check_branch
          %148 = sbr.rel (%p146) target = $region20
        $region19: #{soft_attention.1} parent=11 // pred_region
          _
        $region20: #{soft_attention.1} parent=11 // pred_fallthru
          _
      $region12: #{soft_attention.1} parent=5 // pred_fallthru
        _
      %p149 = scmp.lt.s32.totalorder %s11, 2
      // Predicated region
      $region21: #{soft_attention.1} parent=5 // pred_check
        %p150 = pneg %p149
      $region22: #{soft_attention.1} parent=5 // pred_check_branch
        %152 = sbr.rel (%p150) target = $region24
      $region23: #{soft_attention.1} parent=5 // pred_region
        // Predicated region
        $region25: #{soft_attention.1} parent=23 // pred_check
          %p153 = pneg %p45
        $region26: #{soft_attention.1} parent=23 // pred_check_branch
          %155 = sbr.rel (%p153) target = $region28
        $region27: #{soft_attention.1} parent=23 // pred_region
          %s156 = smul.u32 2, %s19
          %p157 = scmp.lt.s32.totalorder %s18, 1
          %s158 = scalar_select %p157, %s18, 1
          %p159 = scmp.lt.s32.totalorder %s156, 1
          %s160 = scalar_select %p159, %s156, 1
          %s161 = smul.addr %s158, 2
          %s162 = sadd.s32 %s160, %s161
          %s163 = smul.addr %s162, 4
          %s164 = scalar_lea.vmem %s0, %s163
          %s165 = smul.u32 2, %s19
        $region28: #{soft_attention.1} parent=23 // pred_fallthru
          _
      $region24: #{soft_attention.1} parent=5 // pred_fallthru
        _
      %p166 = scmp.le.s32.totalorder 1, %s11
      %p167 = scmp.lt.s32.totalorder %s11, 3
      %p168 = pnand %p166, %p167
      %p169 = pneg %p168
      // Predicated region
      $region29: #{soft_attention.1} parent=5 // pred_check
        _
      $region30: #{soft_attention.1} parent=5 // pred_check_branch
        %171 = sbr.rel (%p168) target = $region32
      $region31: #{soft_attention.1} parent=5 // pred_region
        %s172 = ssub.s32 %s11, 1
        // Predicated region
        $region33: #{soft_attention.1} parent=31 // pred_check
          %p173 = pneg %p72
        $region34: #{soft_attention.1} parent=31 // pred_check_branch
          %175 = sbr.rel (%p173) target = $region36
        $region35: #{soft_attention.1} parent=31 // pred_region
          %177 = dma.done [#allocation4], 16
        $region36: #{soft_attention.1} parent=31 // pred_fallthru
          _
        %178 = sfence
        %s179 = smul.u32 2, %s21
        %p180 = scmp.lt.s32.totalorder %s20, 1
        %s181 = scalar_select %p180, %s20, 1
        %p182 = scmp.lt.s32.totalorder %s179, 1
        %s183 = scalar_select %p182, %s179, 1
        %s184 = smul.addr %s181, 2
        %s185 = sadd.s32 %s183, %s184
        %s186 = smul.addr %s185, 4
        %s187 = scalar_lea.vmem %s0, %s186
        %p188 = pneg %p51
        %p189 = pneg %p48
        %p190 = pneg %p72
        %p191 = pneg %p69
        %p192 = pneg %p93
        %p193 = pneg %p90
        %p194 = pneg %p121
        %p195 = pneg %p118
        %s196 = smul.u32 2, %s21
        %p197 = scmp.lt.s32.totalorder %s20, 1
        %s198 = scalar_select %p197, %s20, 1
        %p199 = scmp.lt.s32.totalorder %s196, 1
        %s200 = scalar_select %p199, %s196, 1
        %s201 = smul.addr %s198, 2
        %s202 = sadd.s32 %s200, %s201
        %s203 = smul.addr %s202, 4
        %s204 = scalar_lea.vmem %s3, %s203
        %s205 = smul.u32 2, %s21
        %p206 = scmp.lt.s32.totalorder %s20, 1
        %s207 = scalar_select %p206, %s20, 1
        %p208 = scmp.lt.s32.totalorder %s205, 1
        %s209 = scalar_select %p208, %s205, 1
        %s210 = smul.addr %s207, 2
        %s211 = sadd.s32 %s209, %s210
        %s212 = smul.addr %s211, 4
        %s213 = scalar_lea.vmem %s0, %s212
        %s214 = smul.u32 2, %s21
        %s215 = smul.u32 2, %s21
        %p216 = scmp.lt.s32.totalorder %s20, 1
        %s217 = scalar_select %p216, %s20, 1
        %p218 = scmp.lt.s32.totalorder %s215, 1
        %s219 = scalar_select %p218, %s215, 1
        %s220 = smul.addr %s217, 2
        %s221 = sadd.s32 %s219, %s220
        %s222 = smul.addr %s221, 4
        %s223 = scalar_lea.vmem %s3, %s222
        %s224 = smul.u32 2, %s21
        %v225 = vld [vmem:[%s213] sm:$0xff]
        %s226 = sld [smem:[#allocation3]]
        %v227 = vstv %s226
        %v228 = vmul.f32 %v225, %v227
        %s229 = sld [smem:[#allocation2]]
        %v230 = vstv %s229
        %v231 = vadd.f32 %v228, %v230
        %s232 = sld [smem:[#allocation3 + $0x1]]
        %v233 = vstv %s232
        %v234 = vmul.f32 %v225, %v233
        %v236 = vrot.slane %v234, 5
        %v237 = vrot.slane %v236, 4
        %v239 = vadd.f32 %v231, %v237
        %s240 = sld [smem:[#allocation3 + $0x2]]
        %v241 = vstv %s240
        %v242 = vmul.f32 %v225, %v241
        %v244 = vrot.slane %v242, 6
        %v245 = vrot.slane %v244, 4
        %v247 = vadd.f32 %v239, %v245
        %s248 = sld [smem:[#allocation3 + $0x3]]
        %v249 = vstv %s248
        %v250 = vmul.f32 %v225, %v249
        %v252 = vrot.slane %v250, 7
        %v253 = vrot.slane %v252, 4
        %v255 = vadd.f32 %v247, %v253
        %v256 = vxor.u32 %v255, 2147483648
        %v257 = vmul.f32 %v256, 1.442695
        %v258 = vpow.pop %v257
        %v259 = vadd.f32 %v258, 1.0
        %v260 = vrcp.pop %v259
        %v261 = vmul.f32 %v259, %v260
        %v262 = vsub.f32 1.0, %v261
        %v263 = vmul.f32 %v260, %v262
        %v264 = vadd.f32 %v260, %v263
        %vm265 = vweird.f32 %v259
        %vm266 = vweird.f32 %v260
        %vm267 = vmor %vm265, %vm266
        %v268 = vsel %vm267, %v260, %v264
        %v269 = vand.u32 2147483647, %v259
        %vm270 = vcmp.eq.f32.partialorder %v269, 8.507059e+37
        %v271 = vand.u32 %v259, 2147483648
        %v272 = vor.u32 1.1754944e-38, %v271
        %v273 = vsel %vm270, %v272, %v268
        %v274 = vmul.f32 1.0, %v273
        %v276 = vperm.slane %v274, 0
        %v277 = vperm.slane %v274, 4
        %v280 = vperm.slane %v276, 0
        %v281 = vperm.slane %v277, 0
        %v284 = vrot.slane %v281, 4
        %vm285 = vcmask 1043456
        %v286 = vsel %vm285, %v280, %v284
        %v288 = vmul.f32 %v225, %v286
        %289 = vst [vmem:[%s223] sm:$0xff] %v288
        %s290 = smul.u32 2, %s21
        %p291 = scmp.lt.s32.totalorder %s20, 1
        %s292 = scalar_select %p291, %s20, 1
        %p293 = scmp.lt.s32.totalorder %s290, 1
        %s294 = scalar_select %p293, %s290, 1
        %s295 = smul.addr %s292, 2
        %s296 = sadd.s32 %s294, %s295
        %s297 = smul.addr %s296, 4
        %s298 = scalar_lea.vmem %s3, %s297
        // Predicated region
        $region37: #{soft_attention.1} parent=31 // pred_check
          %p299 = pneg %p118
        $region38: #{soft_attention.1} parent=31 // pred_check_branch
          %301 = sbr.rel (%p299) target = $region40
        $region39: #{soft_attention.1} parent=31 // pred_region
          %s302 = smul.u32 2, %s21
        $region40: #{soft_attention.1} parent=31 // pred_fallthru
          _
      $region32: #{soft_attention.1} parent=5 // pred_fallthru
        _
      %p303 = scmp.le.s32.totalorder 2, %s11
      // Predicated region
      $region41: #{soft_attention.1} parent=5 // pred_check
        %p304 = pneg %p303
      $region42: #{soft_attention.1} parent=5 // pred_check_branch
        %306 = sbr.rel (%p304) target = $region44
      $region43: #{soft_attention.1} parent=5 // pred_region
        %s307 = ssub.s32 %s11, 2
        // Predicated region
        $region45: #{soft_attention.1} parent=43 // pred_check
          %p308 = pneg %p124
        $region46: #{soft_attention.1} parent=43 // pred_check_branch
          %310 = sbr.rel (%p308) target = $region48
        $region47: #{soft_attention.1} parent=43 // pred_region
          %s311 = smul.u32 2, %s23
          %p312 = scmp.lt.s32.totalorder %s22, 1
          %s313 = scalar_select %p312, %s22, 1
          %p314 = scmp.lt.s32.totalorder %s311, 1
          %s315 = scalar_select %p314, %s311, 1
          %s316 = smul.addr %s313, 2
          %s317 = sadd.s32 %s315, %s316
          %s318 = smul.addr %s317, 4
          %s319 = scalar_lea.vmem %s3, %s318
        $region48: #{soft_attention.1} parent=43 // pred_fallthru
          _
      $region44: #{soft_attention.1} parent=5 // pred_fallthru
        _
    $region6: #{soft_attention.1} parent=1 // loop_footer
      %s15 = sadd.s32 1, %s11
    $region7: #{soft_attention.1} parent=1 // loop_footer_branch
      %10 = sbr.rel target = $region3
    $region8: #{soft_attention.1} parent=1 // loop_exit
      _
    %320 = vsyncpa [#allocation4], 1
    %s321 = scalar_lea.sflag [#allocation4], 1
    %322 = vsyncpa %s321, 1

</llo_original>
